<compile_context>
chip_gen: v6e
topology: v6e:2x2x1
jax: 0.10.0
libtpu: 0.0.40
codegen_flags: <defaults>
</compile_context>

<pallas_src>
import jax
import jax.numpy as jnp
from jax.experimental import pallas as pl
from jax.experimental.pallas import tpu as pltpu


def _round_up(n, m):
    return ((n + m - 1) // m) * m


def _pick_h_tile(h, row_bytes, target_bytes):
    """h-tile: full h if it fits the target, else a multiple of 8 (ragged last tile ok)."""
    if h * row_bytes <= target_bytes:
        return h
    cap = max(1, target_bytes // row_bytes)
    th = (cap // 8) * 8
    if th >= 8:
        return min(th, h)
    # A single 8-row tile already exceeds the target; keep the smallest legal tile.
    return h if h < 8 else 8


def _largest_divisor_leq(n, cap):
    cap = max(1, min(n, cap))
    for t in range(cap, 0, -1):
        if n % t == 0:
            return t
    return 1


def _batch_broadcast_kernel(slab_ref, out_ref):
    """slab_ref: (TH, L) one-batch slab tile; out_ref: (TB, TH, L) output block."""
    slab = slab_ref[...]
    # TB is a small static int -> unrolled full-tile, lane-dense stores.
    for b in range(out_ref.shape[0]):
        out_ref[b] = slab


def position_embedding_learned_3d(B, h, w, d, x, row_weight, col_weight, dep_weight):
    """Pallas-backed equivalent of PositionEmbeddingLearned3d.forward."""
    del x  # only consulted for device placement in the torch reference
    dtype = row_weight.dtype
    C = row_weight.shape[1]
    h_patch_num = row_weight.shape[0]
    w_patch_num = col_weight.shape[0]
    d_patch_num = dep_weight.shape[0]

    # ---- tiny glue: gathers + one batch's worth of the (lane-dense) slab ----
    # NOTE: if h > h_patch_num the index becomes -1 (wraps in JAX); torch would raise.
    i = (jnp.arange(h) + 1) * (h_patch_num // h) - 1
    j = (jnp.arange(w) + 1) * (w_patch_num // w) - 1
    k = (jnp.arange(d) + 1) * (d_patch_num // d) - 1
    x_emb = jnp.broadcast_to(row_weight[i][:, None, None, :], (h, w, d, C))
    y_emb = jnp.broadcast_to(col_weight[j][None, :, None, :], (h, w, d, C))
    z_emb = jnp.broadcast_to(dep_weight[k][None, None, :, :], (h, w, d, C))
    L = w * d * 3 * C
    slab = jnp.concatenate([x_emb, y_emb, z_emb], axis=-1).reshape(h, L).astype(dtype)

    itemsize = jnp.dtype(dtype).itemsize
    lanes = _round_up(L, 128)               # VMEM lane padding of the last dim
    row_bytes = lanes * itemsize            # one h-row of a (padded) block

    # ---- generation-aware tile / VMEM budgeting (v7x: 64 MiB, v5e/v6e: 128 MiB) ----
    try:
        vmem_cap = int(getattr(pltpu.get_tpu_info(), "vmem_capacity_bytes", 64 << 20))
    except Exception:  # not on a TPU backend (e.g. interpreter) -> conservative default
        vmem_cap = 64 << 20
    target = (4 << 20) if vmem_cap >= (96 << 20) else (2 << 20)

    TH = _pick_h_tile(h, row_bytes, target)
    th_pad = _round_up(TH, 8)               # f32 sublane padding
    TB = _largest_divisor_leq(B, max(1, target // (th_pad * row_bytes)))
    n_h = pl.cdiv(h, TH)
    n_b = B // TB

    out_block_bytes = TB * th_pad * row_bytes
    slab_block_bytes = th_pad * row_bytes
    need = 2 * (out_block_bytes + slab_block_bytes) + (1 << 20)   # double-buffered + slack
    vmem_limit = int(min(max(2 * need, 16 << 20), int(0.9 * vmem_cap)))
    vmem_limit = int(max(vmem_limit, need))

    out_bytes = B * h * L * itemsize
    cost = pl.CostEstimate(flops=0, transcendentals=0,
                           bytes_accessed=out_bytes + n_b * h * L * itemsize)

    out3 = pl.pallas_call(
        _batch_broadcast_kernel,
        out_shape=jax.ShapeDtypeStruct((B, h, L), dtype),
        grid=(n_b, n_h),
        in_specs=[pl.BlockSpec((TH, L), lambda ib, ih: (ih, 0))],
        out_specs=pl.BlockSpec((TB, TH, L), lambda ib, ih: (ib, ih, 0)),
        compiler_params=pltpu.CompilerParams(
            dimension_semantics=("parallel", "parallel"),
            vmem_limit_bytes=vmem_limit,
        ),
        cost_estimate=cost,
    )(slab)

    # Free, row-major contiguous view: (B, h, w*d*3C) -> (B, h*w*d, 3C).
    return out3.reshape(B, h * w * d, 3 * C)


def _reference(B, h, w, d, row_weight, col_weight, dep_weight):
    """Pure-JAX reference reproducing the torch semantics exactly."""
    h_patch_num = row_weight.shape[0]
    w_patch_num = col_weight.shape[0]
    d_patch_num = dep_weight.shape[0]
    C = row_weight.shape[1]
    i = (jnp.arange(h) + 1) * (h_patch_num // h) - 1
    j = (jnp.arange(w) + 1) * (w_patch_num // w) - 1
    k = (jnp.arange(d) + 1) * (d_patch_num // d) - 1
    x_emb = jnp.broadcast_to(row_weight[i][:, None, None, :], (h, w, d, C))
    y_emb = jnp.broadcast_to(col_weight[j][None, :, None, :], (h, w, d, C))
    z_emb = jnp.broadcast_to(dep_weight[k][None, None, :, :], (h, w, d, C))
    pos = jnp.concatenate([x_emb, y_emb, z_emb], axis=-1)        # (h, w, d, 3C)
    pos = jnp.broadcast_to(pos[None], (B,) + pos.shape)          # (B, h, w, d, 3C)
    return pos.reshape(B, h * w * d, -1)


if __name__ == "__main__":
    # Module hyperparameters (small, consistent with the torch __init__).
    num_pos_feats = 32
    h_patch_num, w_patch_num, d_patch_num = 16, 16, 64

    # Deterministic "learned" parameters: nn.init.uniform_ -> U[0, 1).
    key = jax.random.PRNGKey(0)
    k_row, k_col, k_dep, k_x = jax.random.split(key, 4)
    row_weight = jax.random.uniform(k_row, (h_patch_num, num_pos_feats), jnp.float32)
    col_weight = jax.random.uniform(k_col, (w_patch_num, num_pos_feats), jnp.float32)
    dep_weight = jax.random.uniform(k_dep, (d_patch_num, num_pos_feats), jnp.float32)

    # Forward-call arguments (x is only consulted for device in the torch code).
    B, h, w, d = 2, 4, 4, 8
    x = jax.random.normal(k_x, (2, 4, 16, 16), jnp.float32)

    pos = position_embedding_learned_3d(
        B, h, w, d, x, row_weight, col_weight, dep_weight
    )
    pos = jax.block_until_ready(pos)

    ref = _reference(B, h, w, d, row_weight, col_weight, dep_weight)
    assert pos.shape == (B, h * w * d, 3 * num_pos_feats), pos.shape
    assert jnp.allclose(pos, ref, atol=1e-6), "mismatch vs reference"

    print("KERNEL_OK")
</pallas_src>

<mosaic_0001>
module attributes {stable_mosaic.version = 11 : i64} {
  func.func @_batch_broadcast_kernel(%arg0: i32, %arg1: i32, %arg2: memref<4x3072xf32, #tpu.memory_space<vmem>>, %arg3: memref<2x4x3072xf32, #tpu.memory_space<vmem>>) attributes {dimension_semantics = [#tpu.dimension_semantics<parallel>, #tpu.dimension_semantics<parallel>], iteration_bounds = array<i64: 1, 1>, scalar_prefetch = 0 : i64, scratch_operands = 0 : i64, tpu.core_type = #tpu.core_type<tc>, window_params = [{transform_indices = @transform_0, window_bounds = array<i64: 4, 3072>}, {transform_indices = @transform_1, window_bounds = array<i64: 2, 4, 3072>}]} {
    %c0 = arith.constant 0 : index
    %c0_0 = arith.constant 0 : index
    %0 = vector.load %arg2[%c0, %c0_0] : memref<4x3072xf32, #tpu.memory_space<vmem>>, vector<4x3072xf32>
    %c0_1 = arith.constant 0 : index
    %c0_2 = arith.constant 0 : index
    %c0_3 = arith.constant 0 : index
    %1 = vector.load %arg3[%c0_1, %c0_2, %c0_3] : memref<2x4x3072xf32, #tpu.memory_space<vmem>>, vector<1x4x3072xf32>
    %2 = vector.shape_cast %1 : vector<1x4x3072xf32> to vector<4x3072xf32>
    %3 = vector.shape_cast %0 : vector<4x3072xf32> to vector<1x4x3072xf32>
    tpu.vector_store %arg3[%c0_1, %c0_2, %c0_3], %3 {strides = array<i32>} : memref<2x4x3072xf32, #tpu.memory_space<vmem>>, vector<1x4x3072xf32>,
    %c1 = arith.constant 1 : index
    %c0_4 = arith.constant 0 : index
    %c0_5 = arith.constant 0 : index
    %4 = vector.load %arg3[%c1, %c0_4, %c0_5] : memref<2x4x3072xf32, #tpu.memory_space<vmem>>, vector<1x4x3072xf32>
    %5 = vector.shape_cast %4 : vector<1x4x3072xf32> to vector<4x3072xf32>
    %6 = vector.shape_cast %0 : vector<4x3072xf32> to vector<1x4x3072xf32>
    tpu.vector_store %arg3[%c1, %c0_4, %c0_5], %6 {strides = array<i32>} : memref<2x4x3072xf32, #tpu.memory_space<vmem>>, vector<1x4x3072xf32>,
    return
  }
  func.func @transform_0(%arg0: i32, %arg1: i32) -> (i32, i32) {
    %c0_i32 = arith.constant 0 : i32
    %c0_i32_0 = arith.constant 0 : i32
    return %arg1, %c0_i32 : i32, i32
  }
  func.func @transform_1(%arg0: i32, %arg1: i32) -> (i32, i32, i32) {
    %c0_i32 = arith.constant 0 : i32
    %c0_i32_0 = arith.constant 0 : i32
    return %arg0, %arg1, %c0_i32 : i32, i32, i32
  }
}

</mosaic_0001>

<llo_original>
// kernel: tpu_custom_call.1
$region0: #{tpu_custom_call.1}
  #allocation0 [shape = 'u32[]', space=smem, size = 0x4, offset = 0x4, fixed_abs, tag = 'smem constant byte address 0x4 - core index']
  #allocation1 [shape = 'u32[144,128]{1,0:T(1,128)}', space=vmem, size = 0x12000, scoped, tag = 'internal scratch']
  %s0 = inlined_call_operand.hbm [shape: f32[4,3072], index: 0, kind: input, shape index: {}]
  %s1 = inlined_call_operand.hbm [shape: f32[2,4,3072], index: 1, kind: output, shape index: {}]
  %s2 = sld [smem:[#allocation0]]
  $region18: #{tpu_custom_call.1} parent=0
    _
  %s4 = ssub.s32 1, %s2
  %s5 = scalar_select 0, %s4, %s2
  $region1: #{tpu_custom_call.1} parent=0
    #allocation2 [shape = 'u8[49152]{0}', space=vmem, size = 0xc000, scoped, tag = 'input window, operand 0, single buffered']
    #allocation3 [shape = 's32[1]{0}', space=sflag, size = 0x4, scoped, tag = 'scoped memory for tpu_custom_call.1']
    #allocation4 [shape = 's32[1]{0}', space=sflag, size = 0x4, scoped, tag = 'scoped memory for tpu_custom_call.1']
    #allocation5 [shape = 'u8[98304]{0}', space=vmem, size = 0x18000, scoped, tag = 'output window, operand 0, single buffered']
    %6 = vsyncpa [#allocation3], 0
    %7 = vsyncpa [#allocation4], 0
    // Predicated region
    $region2: #{tpu_custom_call.1} parent=1 // pred_check
      _
    $region3: #{tpu_custom_call.1} parent=1 // pred_check_branch
      %9 = sbr.rel (0) target = $region5
    $region4: #{tpu_custom_call.1} parent=1 // pred_region
      %s11 = ssub.s32 1536, 1536
      %12 = vsyncadd [#allocation3], %s11
      %s14 = sshll.u32 [#allocation2], 4
      %s15 = int_to_ptr.vmem [resolvable:$true] %s14
      %17 = dma.hbm_to_vmem [thread:$0]  %s0, 1536, %s15, [#allocation3]
    $region5: #{tpu_custom_call.1} parent=1 // pred_fallthru
      _
    // Predicated region
    $region6: #{tpu_custom_call.1} parent=1 // pred_check
      _
    $region7: #{tpu_custom_call.1} parent=1 // pred_check_branch
      %19 = sbr.rel (0) target = $region9
    $region8: #{tpu_custom_call.1} parent=1 // pred_region
      %20 = dma.done [#allocation3], 1536
    $region9: #{tpu_custom_call.1} parent=1 // pred_fallthru
      _
    %v21 = vld [vmem:[#allocation2] sm:$0xff]
    %v22 = vld [vmem:[#allocation2 + $0x8] sm:$0xff]
    %v23 = vld [vmem:[#allocation2 + $0x10] sm:$0xff]
    %v24 = vld [vmem:[#allocation2 + $0x18] sm:$0xff]
    %v25 = vld [vmem:[#allocation2 + $0x20] sm:$0xff]
    %v26 = vld [vmem:[#allocation2 + $0x28] sm:$0xff]
    %v27 = vld [vmem:[#allocation2 + $0x30] sm:$0xff]
    %v28 = vld [vmem:[#allocation2 + $0x38] sm:$0xff]
    %v29 = vld [vmem:[#allocation2 + $0x40] sm:$0xff]
    %v30 = vld [vmem:[#allocation2 + $0x48] sm:$0xff]
    %v31 = vld [vmem:[#allocation2 + $0x50] sm:$0xff]
    %v32 = vld [vmem:[#allocation2 + $0x58] sm:$0xff]
    %33 = vst [vmem:[#allocation5] sm:$0xff] %v21
    %34 = vst [vmem:[#allocation5 + $0x8] sm:$0xff] %v22
    %35 = vst [vmem:[#allocation5 + $0x10] sm:$0xff] %v23
    %36 = vst [vmem:[#allocation5 + $0x18] sm:$0xff] %v24
    %37 = vst [vmem:[#allocation5 + $0x20] sm:$0xff] %v25
    %38 = vst [vmem:[#allocation5 + $0x28] sm:$0xff] %v26
    %39 = vst [vmem:[#allocation5 + $0x30] sm:$0xff] %v27
    %40 = vst [vmem:[#allocation5 + $0x38] sm:$0xff] %v28
    %41 = vst [vmem:[#allocation5 + $0x40] sm:$0xff] %v29
    %42 = vst [vmem:[#allocation5 + $0x48] sm:$0xff] %v30
    %43 = vst [vmem:[#allocation5 + $0x50] sm:$0xff] %v31
    %44 = vst [vmem:[#allocation5 + $0x58] sm:$0xff] %v32
    %s45 = scalar_lea.vmem [#allocation5], 96
    %46 = vst [vmem:[%s45] sm:$0xff] %v21
    %47 = vst [vmem:[%s45 + $0x8] sm:$0xff] %v22
    %48 = vst [vmem:[%s45 + $0x10] sm:$0xff] %v23
    %49 = vst [vmem:[%s45 + $0x18] sm:$0xff] %v24
    %50 = vst [vmem:[%s45 + $0x20] sm:$0xff] %v25
    %51 = vst [vmem:[%s45 + $0x28] sm:$0xff] %v26
    %52 = vst [vmem:[%s45 + $0x30] sm:$0xff] %v27
    %53 = vst [vmem:[%s45 + $0x38] sm:$0xff] %v28
    %54 = vst [vmem:[%s45 + $0x40] sm:$0xff] %v29
    %55 = vst [vmem:[%s45 + $0x48] sm:$0xff] %v30
    %56 = vst [vmem:[%s45 + $0x50] sm:$0xff] %v31
    %57 = vst [vmem:[%s45 + $0x58] sm:$0xff] %v32
    // Predicated region
    $region10: #{tpu_custom_call.1} parent=1 // pred_check
      _
    $region11: #{tpu_custom_call.1} parent=1 // pred_check_branch
      %59 = sbr.rel (0) target = $region13
    $region12: #{tpu_custom_call.1} parent=1 // pred_region
      %s61 = ssub.s32 3072, 3072
      %62 = vsyncadd [#allocation4], %s61
      %s63 = sshll.u32 [#allocation5], 4
      %s64 = int_to_ptr.vmem [resolvable:$true] %s63
      %69 = dma.vmem_to_hbm [thread:$0]  %s64, 3072, %s1, [#allocation4], 1536, 1536, 96
    $region13: #{tpu_custom_call.1} parent=1 // pred_fallthru
      _
    // Predicated region
    $region14: #{tpu_custom_call.1} parent=1 // pred_check
      _
    $region15: #{tpu_custom_call.1} parent=1 // pred_check_branch
      %71 = sbr.rel (0) target = $region17
    $region16: #{tpu_custom_call.1} parent=1 // pred_region
      %72 = dma.done [#allocation4], 3072
    $region17: #{tpu_custom_call.1} parent=1 // pred_fallthru
      _
    %73 = vsyncpa [#allocation3], 1
    %74 = vsyncpa [#allocation4], 1

</llo_original>
